<compile_context>
chip_gen: v7x
topology: tpu7x:2x2x1
jax: 0.10.0
libtpu: 0.0.40
codegen_flags: <defaults>
</compile_context>

<pallas_src>
import numpy as np
import jax
import jax.numpy as jnp
from jax.experimental import pallas as pl
from jax.experimental.pallas import tpu as pltpu

_SUBLANE = 8


def _round_up(v, m):
    return ((v + m - 1) // m) * m


# ---------------------------------------------------------------------------
# Fused kernel: one grid step = one row tile; all L networks + selection fused.
# ---------------------------------------------------------------------------
def _make_fused_kernel(num_networks, num_layers, d_in, d_out):
    def kernel(x_ref, *rest):
        o_ref = rest[-1]
        wb = rest[:-1]                                 # alternating (w_ref, b_ref)
        xall = x_ref[...]                              # (TN, d_in + 1) f32
        x = xall[:, :d_in]                             # observations
        lac = xall[:, d_in:d_in + 1]                   # float-encoded network index
        h = x
        for li in range(num_layers):                   # packed: ONE matmul per layer
            w = wb[2 * li][...]                        # (K_pk, L*H) concat / block-diag
            b = wb[2 * li + 1][...]                    # (1, L*H)
            h = jnp.dot(h, w, preferred_element_type=jnp.float32) + b
            if li < num_layers - 1:                    # ReLU between linears only
                h = jnp.maximum(h, 0.0)
        # h: (TN, L*d_out); lane group l holds network l's output for every row.
        # Per-row selection; out-of-range laac silently keeps network 0's output.
        acc = h[:, :d_out]                             # init from net 0 (no zero pass)
        for l in range(1, num_networks):
            acc = jnp.where(lac == float(l), h[:, l * d_out:(l + 1) * d_out], acc)
        o_ref[...] = acc.astype(o_ref.dtype)
    return kernel


def _pack_networks(weights, biases):
    """Pack L per-network layer params so each layer is one matmul.

    weights[i]: (L, d_in_i, d_out_i), biases[i]: (L, 1, d_out_i)
    Returns packed 2-D weights/biases: layer 0 -> (d_in0, L*d_out0) lane-concat,
    layer k>0 -> block-diagonal (L*d_in_k, L*d_out_k)."""
    L = weights[0].shape[0]
    pw = [jnp.concatenate([weights[0][l] for l in range(L)], axis=1)]
    pb = [jnp.concatenate([biases[0][l] for l in range(L)], axis=1)]
    for i in range(1, len(weights)):
        pw.append(jax.scipy.linalg.block_diag(*[weights[i][l] for l in range(L)]))
        pb.append(jnp.concatenate([biases[i][l] for l in range(L)], axis=1))
    return pw, pb


def fused_multi_mlp_select(x_flat, laac_flat, weights, biases, *,
                           row_tile=2048, split_threshold=256):
    """x_flat: (N, D_in) f32. laac_flat: (N,) int -- network index per row.
    weights[i]: (L, d_in_i, d_out_i). biases[i]: (L, 1, d_out_i).
    Returns (N, d_out_last) f32 with out[r] = MLP_{laac_flat[r]}(x_flat[r])."""
    L = weights[0].shape[0]
    num_layers = len(weights)
    N, D_in = x_flat.shape
    Dout = weights[-1].shape[-1]

    # --- pack all L networks into the lane dimension (one matmul per layer) ---
    pw, pb = _pack_networks(weights, biases)

    # --- fold laac into the activation stream as one extra f32 column ---------
    # (small non-negative ints are exactly representable in f32 -> exact compare)
    lac_col = laac_flat.astype(jnp.float32).reshape(N, 1)
    x_aug = jnp.concatenate([x_flat.astype(jnp.float32), lac_col], axis=1)  # (N, D_in+1)

    # --- row tiling: large tiles; >=2 tiles for mid/large N (v7x megacore) -----
    assert row_tile % _SUBLANE == 0
    if N <= split_threshold:
        TN = _round_up(N, _SUBLANE)                    # single tile for tiny batches
    else:
        n_tiles = max(2, pl.cdiv(N, row_tile))         # >=2 so both v7x TCs get work
        TN = _round_up(pl.cdiv(N, n_tiles), _SUBLANE)
    N_pad = _round_up(N, TN)
    if N_pad != N:
        # padded rows carry laac == 0 -> compute garbage via net 0, sliced off below
        x_aug = jnp.pad(x_aug, ((0, N_pad - N), (0, 0)))

    in_specs = [pl.BlockSpec((TN, D_in + 1), lambda n: (n, 0))]   # streamed rows
    args = [x_aug]
    for w, b in zip(pw, pb):
        # full packed blocks; constant index_map -> resident across the row axis
        in_specs.append(pl.BlockSpec(w.shape, lambda n: (0, 0)))
        in_specs.append(pl.BlockSpec(b.shape, lambda n: (0, 0)))
        args.extend([w, b])
    # true-width output block (no 128-lane padding, no wrapper column slice)
    out_spec = pl.BlockSpec((TN, Dout), lambda n: (n, 0))

    out = pl.pallas_call(
        _make_fused_kernel(L, num_layers, D_in, Dout),
        out_shape=jax.ShapeDtypeStruct((N_pad, Dout), jnp.float32),
        grid_spec=pltpu.PrefetchScalarGridSpec(
            num_scalar_prefetch=0,
            grid=(N_pad // TN,),
            in_specs=in_specs,
            out_specs=out_spec,
        ),
        compiler_params=pltpu.CompilerParams(
            dimension_semantics=("parallel",),   # row tiles shard across v7x's 2 TCs
            vmem_limit_bytes=32 * 1024 * 1024,
        ),
    )(*args)
    return out if N_pad == N else out[:N]


# ---------------------------------------------------------------------------
# Forward pass matching MultiAgentFCNetwork.forward (2-D input branch).
# ---------------------------------------------------------------------------
def multi_agent_fc_forward(inputs, laac_indices, params):
    # TODO(synk): only the 2-D observation branch (inputs[0].dim() == 2) is implemented.
    x = jnp.stack(inputs)                              # (A, B, D) == torch.stack(inputs)
    A, B, D = x.shape
    x_flat = x.reshape(A * B, D)
    # torch gather(0, laac_indices.T expanded): row (a, b) selects net laac_indices[b, a]
    laac_flat = laac_indices.T.reshape(A * B)
    sel = fused_multi_mlp_select(x_flat, laac_flat,
                                 params["weights"], params["biases"])   # (A*B, Dout)
    sel = sel.reshape(A, B, -1)
    # split(1, dim=1) + squeeze -> list of per-agent (B, Dout)
    return [sel[a] for a in range(A)]


# ---------------------------------------------------------------------------
# Deterministic parameter construction (orthogonal weights, small random biases).
# Note: PyTorch leaves the first Linear at default init and zeroes later biases; this
# is synthetic init -- random biases are used so the in-kernel bias broadcast is
# actually exercised by the correctness check.
# ---------------------------------------------------------------------------
def _orthogonal(key, shape, gain):
    rows, cols = shape
    a = jax.random.normal(key, (max(rows, cols), min(rows, cols)), dtype=jnp.float32)
    q, r = jnp.linalg.qr(a)
    q = q * jnp.sign(jnp.diag(r))[None, :]
    if rows < cols:
        q = q.T
    return gain * q[:rows, :cols]


def init_params(key, input_size, idims, laac_size):
    dims = [input_size] + list(idims)
    weights, biases = [], []
    for li in range(len(idims)):
        d_in, d_out = dims[li], dims[li + 1]
        ws = []
        for _ in range(laac_size):
            key, sub = jax.random.split(key)
            ws.append(_orthogonal(sub, (d_in, d_out), gain=float(np.sqrt(2.0))))
        key, sub = jax.random.split(key)
        weights.append(jnp.stack(ws))                                   # (L, d_in, d_out)
        biases.append(0.1 * jax.random.normal(sub, (laac_size, 1, d_out), jnp.float32))
    return {"weights": weights, "biases": biases}


# ---------------------------------------------------------------------------
# Pure-JAX reference (mirrors the PyTorch graph) for the correctness check.
# ---------------------------------------------------------------------------
def ref_forward(inputs, laac_indices, params):
    x = jnp.stack(inputs)                              # (A, B, D)
    L = params["weights"][0].shape[0]
    outs = []
    for l in range(L):
        h = x
        for li, (w, b) in enumerate(zip(params["weights"], params["biases"])):
            h = h @ w[l] + b[l]
            if li < len(params["weights"]) - 1:
                h = jnp.maximum(h, 0.0)
        outs.append(h)
    out = jnp.stack(outs)                              # (L, A, B, Dout)
    idx = laac_indices.T
    A, B = idx.shape
    sel = out[idx, jnp.arange(A)[:, None], jnp.arange(B)[None, :], :]
    return [sel[a] for a in range(A)]


if __name__ == "__main__":
    A = 3            # number of agents (len(inputs))
    B = 8            # batch
    D = 16           # obs dim (input_sizes = [16, 16])
    L = 2            # laac_size = len(input_sizes)
    idims = [32, 32, 8]

    key = jax.random.PRNGKey(0)
    k_in, k_idx, k_par = jax.random.split(key, 3)

    inputs = [jax.random.normal(jax.random.fold_in(k_in, a), (B, D), jnp.float32)
              for a in range(A)]
    laac_indices = jax.random.randint(k_idx, (B, A), 0, L, dtype=jnp.int32)
    params = init_params(k_par, D, idims, L)

    fwd = jax.jit(multi_agent_fc_forward)
    outs = fwd(inputs, laac_indices, params)
    outs = [jax.block_until_ready(o) for o in outs]

    assert len(outs) == A
    assert all(o.shape == (B, idims[-1]) for o in outs)

    refs = ref_forward(inputs, laac_indices, params)
    for o, r in zip(outs, refs):
        np.testing.assert_allclose(np.asarray(o), np.asarray(r), rtol=1e-5, atol=1e-5)

    print("KERNEL_OK")
</pallas_src>

<mosaic_0001>
module attributes {stable_mosaic.version = 11 : i64} {
  func.func @kernel(%arg0: i32, %arg1: memref<24x17xf32, #tpu.memory_space<vmem>>, %arg2: memref<16x64xf32, #tpu.memory_space<vmem>>, %arg3: memref<1x64xf32, #tpu.memory_space<vmem>>, %arg4: memref<64x64xf32, #tpu.memory_space<vmem>>, %arg5: memref<1x64xf32, #tpu.memory_space<vmem>>, %arg6: memref<64x16xf32, #tpu.memory_space<vmem>>, %arg7: memref<1x16xf32, #tpu.memory_space<vmem>>, %arg8: memref<24x8xf32, #tpu.memory_space<vmem>>) attributes {dimension_semantics = [#tpu.dimension_semantics<parallel>], iteration_bounds = array<i64: 1>, scalar_prefetch = 0 : i64, scratch_operands = 0 : i64, tpu.core_type = #tpu.core_type<tc>, window_params = [{transform_indices = @transform_0, window_bounds = array<i64: 24, 17>}, {pipeline_mode = #tpu.pipeline_mode<synchronous>, transform_indices = @transform_1, window_bounds = array<i64: 16, 64>}, {pipeline_mode = #tpu.pipeline_mode<synchronous>, transform_indices = @transform_2, window_bounds = array<i64: 1, 64>}, {pipeline_mode = #tpu.pipeline_mode<synchronous>, transform_indices = @transform_3, window_bounds = array<i64: 64, 64>}, {pipeline_mode = #tpu.pipeline_mode<synchronous>, transform_indices = @transform_4, window_bounds = array<i64: 1, 64>}, {pipeline_mode = #tpu.pipeline_mode<synchronous>, transform_indices = @transform_5, window_bounds = array<i64: 64, 16>}, {pipeline_mode = #tpu.pipeline_mode<synchronous>, transform_indices = @transform_6, window_bounds = array<i64: 1, 16>}, {transform_indices = @transform_7, window_bounds = array<i64: 24, 8>}]} {
    %c0 = arith.constant 0 : index
    %c0_0 = arith.constant 0 : index
    %0 = vector.load %arg1[%c0, %c0_0] : memref<24x17xf32, #tpu.memory_space<vmem>>, vector<24x17xf32>
    %1 = vector.extract_strided_slice %0 {offsets = [0, 0], sizes = [24, 16], strides = [1, 1]} : vector<24x17xf32> to vector<24x16xf32>
    %2 = vector.extract_strided_slice %0 {offsets = [0, 16], sizes = [24, 1], strides = [1, 1]} : vector<24x17xf32> to vector<24x1xf32>
    %c0_1 = arith.constant 0 : index
    %c0_2 = arith.constant 0 : index
    %3 = vector.load %arg2[%c0_1, %c0_2] : memref<16x64xf32, #tpu.memory_space<vmem>>, vector<16x64xf32>
    %c0_3 = arith.constant 0 : index
    %c0_4 = arith.constant 0 : index
    %4 = vector.load %arg3[%c0_3, %c0_4] : memref<1x64xf32, #tpu.memory_space<vmem>>, vector<1x64xf32>
    %cst = arith.constant dense<0.000000e+00> : vector<24x64xf32>
    %5 = tpu.matmul %1, %3, %cst {dimension_numbers = #tpu.dot_dimension_numbers<[1], [0], [0], [1], [0, 0, 1, 1], [], []>} : vector<24x16xf32>, vector<16x64xf32>, vector<24x64xf32> -> vector<24x64xf32>
    %6 = vector.broadcast %4 : vector<1x64xf32> to vector<24x64xf32>
    %7 = arith.addf %5, %6 : vector<24x64xf32>
    %cst_5 = arith.constant 0.000000e+00 : f32
    %8 = vector.broadcast %cst_5 : f32 to vector<24x64xf32>
    %9 = arith.maximumf %7, %8 : vector<24x64xf32>
    %c0_6 = arith.constant 0 : index
    %c0_7 = arith.constant 0 : index
    %10 = vector.load %arg4[%c0_6, %c0_7] : memref<64x64xf32, #tpu.memory_space<vmem>>, vector<64x64xf32>
    %c0_8 = arith.constant 0 : index
    %c0_9 = arith.constant 0 : index
    %11 = vector.load %arg5[%c0_8, %c0_9] : memref<1x64xf32, #tpu.memory_space<vmem>>, vector<1x64xf32>
    %cst_10 = arith.constant dense<0.000000e+00> : vector<24x64xf32>
    %12 = tpu.matmul %9, %10, %cst_10 {dimension_numbers = #tpu.dot_dimension_numbers<[1], [0], [0], [1], [0, 0, 1, 1], [], []>} : vector<24x64xf32>, vector<64x64xf32>, vector<24x64xf32> -> vector<24x64xf32>
    %13 = vector.broadcast %11 : vector<1x64xf32> to vector<24x64xf32>
    %14 = arith.addf %12, %13 : vector<24x64xf32>
    %cst_11 = arith.constant 0.000000e+00 : f32
    %15 = vector.broadcast %cst_11 : f32 to vector<24x64xf32>
    %16 = arith.maximumf %14, %15 : vector<24x64xf32>
    %c0_12 = arith.constant 0 : index
    %c0_13 = arith.constant 0 : index
    %17 = vector.load %arg6[%c0_12, %c0_13] : memref<64x16xf32, #tpu.memory_space<vmem>>, vector<64x16xf32>
    %c0_14 = arith.constant 0 : index
    %c0_15 = arith.constant 0 : index
    %18 = vector.load %arg7[%c0_14, %c0_15] : memref<1x16xf32, #tpu.memory_space<vmem>>, vector<1x16xf32>
    %cst_16 = arith.constant dense<0.000000e+00> : vector<24x16xf32>
    %19 = tpu.matmul %16, %17, %cst_16 {dimension_numbers = #tpu.dot_dimension_numbers<[1], [0], [0], [1], [0, 0, 1, 1], [], []>} : vector<24x64xf32>, vector<64x16xf32>, vector<24x16xf32> -> vector<24x16xf32>
    %20 = vector.broadcast %18 : vector<1x16xf32> to vector<24x16xf32>
    %21 = arith.addf %19, %20 : vector<24x16xf32>
    %22 = vector.extract_strided_slice %21 {offsets = [0, 0], sizes = [24, 8], strides = [1, 1]} : vector<24x16xf32> to vector<24x8xf32>
    %cst_17 = arith.constant 1.000000e+00 : f32
    %23 = vector.broadcast %cst_17 : f32 to vector<24x1xf32>
    %24 = arith.cmpf oeq, %2, %23 : vector<24x1xf32>
    %25 = vector.extract_strided_slice %21 {offsets = [0, 8], sizes = [24, 8], strides = [1, 1]} : vector<24x16xf32> to vector<24x8xf32>
    %26 = vector.shape_cast %24 : vector<24x1xi1> to vector<24x1xi1>
    %27 = vector.broadcast %26 : vector<24x1xi1> to vector<24x8xi1>
    %28 = arith.select %27, %25, %22 : vector<24x8xi1>, vector<24x8xf32>
    %c0_18 = arith.constant 0 : index
    %c0_19 = arith.constant 0 : index
    %29 = vector.load %arg8[%c0_18, %c0_19] : memref<24x8xf32, #tpu.memory_space<vmem>>, vector<24x8xf32>
    tpu.vector_store %arg8[%c0_18, %c0_19], %28 {strides = array<i32>} : memref<24x8xf32, #tpu.memory_space<vmem>>, vector<24x8xf32>,
    return
  }
  func.func @transform_0(%arg0: i32) -> (i32, i32) {
    %c0_i32 = arith.constant 0 : i32
    %c0_i32_0 = arith.constant 0 : i32
    return %arg0, %c0_i32 : i32, i32
  }
  func.func @transform_1(%arg0: i32) -> (i32, i32) {
    %c0_i32 = arith.constant 0 : i32
    %c0_i32_0 = arith.constant 0 : i32
    %c0_i32_1 = arith.constant 0 : i32
    return %c0_i32, %c0_i32_0 : i32, i32
  }
  func.func @transform_2(%arg0: i32) -> (i32, i32) {
    %c0_i32 = arith.constant 0 : i32
    %c0_i32_0 = arith.constant 0 : i32
    %c0_i32_1 = arith.constant 0 : i32
    return %c0_i32, %c0_i32_0 : i32, i32
  }
  func.func @transform_3(%arg0: i32) -> (i32, i32) {
    %c0_i32 = arith.constant 0 : i32
    %c0_i32_0 = arith.constant 0 : i32
    %c0_i32_1 = arith.constant 0 : i32
    return %c0_i32, %c0_i32_0 : i32, i32
  }
  func.func @transform_4(%arg0: i32) -> (i32, i32) {
    %c0_i32 = arith.constant 0 : i32
    %c0_i32_0 = arith.constant 0 : i32
    %c0_i32_1 = arith.constant 0 : i32
    return %c0_i32, %c0_i32_0 : i32, i32
  }
  func.func @transform_5(%arg0: i32) -> (i32, i32) {
    %c0_i32 = arith.constant 0 : i32
    %c0_i32_0 = arith.constant 0 : i32
    %c0_i32_1 = arith.constant 0 : i32
    return %c0_i32, %c0_i32_0 : i32, i32
  }
  func.func @transform_6(%arg0: i32) -> (i32, i32) {
    %c0_i32 = arith.constant 0 : i32
    %c0_i32_0 = arith.constant 0 : i32
    %c0_i32_1 = arith.constant 0 : i32
    return %c0_i32, %c0_i32_0 : i32, i32
  }
  func.func @transform_7(%arg0: i32) -> (i32, i32) {
    %c0_i32 = arith.constant 0 : i32
    %c0_i32_0 = arith.constant 0 : i32
    return %arg0, %c0_i32 : i32, i32
  }
}

</mosaic_0001>

<llo_original>
// kernel: multi_agent_fc_forward.1
$region0: #{multi_agent_fc_forward.1}
  #allocation0 [shape = 'u32[]', space=smem, size = 0x4, offset = 0x4, fixed_abs, tag = 'smem constant byte address 0x4 - core index']
  #allocation1 [shape = 'u32[144,128]{1,0:T(1,128)}', space=vmem, size = 0x12000, scoped, tag = 'internal scratch']
  %s0 = inlined_call_operand.vmem [shape: f32[24,17], index: 0, kind: input, shape index: {}]
  %s1 = inlined_call_operand.vmem [shape: f32[16,64], index: 1, kind: input, shape index: {}]
  %s2 = inlined_call_operand.vmem [shape: f32[1,64], index: 2, kind: input, shape index: {}]
  %s3 = inlined_call_operand.vmem [shape: f32[64,64], index: 3, kind: input, shape index: {}]
  %s4 = inlined_call_operand.vmem [shape: f32[1,64], index: 4, kind: input, shape index: {}]
  %s5 = inlined_call_operand.vmem [shape: f32[64,16], index: 5, kind: input, shape index: {}]
  %s6 = inlined_call_operand.vmem [shape: f32[1,16], index: 6, kind: input, shape index: {}]
  %s7 = inlined_call_operand.vmem [shape: f32[24,8], index: 7, kind: output, shape index: {}]
  %s8 = sld [smem:[#allocation0]]
  $region38: #{multi_agent_fc_forward.1} parent=0
    _
  %s10 = ssub.s32 1, %s8
  %s11 = scalar_select 0, %s10, %s8
  // Predicated region
  $region2: #{multi_agent_fc_forward.1} parent=0 // pred_check
    _
  $region3: #{multi_agent_fc_forward.1} parent=0 // pred_check_branch
    %13 = sbr.rel (0) target = $region5
  $region4: #{multi_agent_fc_forward.1} parent=0 // pred_region
    _
  $region5: #{multi_agent_fc_forward.1} parent=0 // pred_fallthru
    _
  // Predicated region
  $region6: #{multi_agent_fc_forward.1} parent=0 // pred_check
    _
  $region7: #{multi_agent_fc_forward.1} parent=0 // pred_check_branch
    %15 = sbr.rel (0) target = $region9
  $region8: #{multi_agent_fc_forward.1} parent=0 // pred_region
    _
  $region9: #{multi_agent_fc_forward.1} parent=0 // pred_fallthru
    _
  // Predicated region
  $region10: #{multi_agent_fc_forward.1} parent=0 // pred_check
    _
  $region11: #{multi_agent_fc_forward.1} parent=0 // pred_check_branch
    %17 = sbr.rel (0) target = $region13
  $region12: #{multi_agent_fc_forward.1} parent=0 // pred_region
    _
  $region13: #{multi_agent_fc_forward.1} parent=0 // pred_fallthru
    _
  // Predicated region
  $region14: #{multi_agent_fc_forward.1} parent=0 // pred_check
    _
  $region15: #{multi_agent_fc_forward.1} parent=0 // pred_check_branch
    %19 = sbr.rel (0) target = $region17
  $region16: #{multi_agent_fc_forward.1} parent=0 // pred_region
    _
  $region17: #{multi_agent_fc_forward.1} parent=0 // pred_fallthru
    _
  // Predicated region
  $region18: #{multi_agent_fc_forward.1} parent=0 // pred_check
    _
  $region19: #{multi_agent_fc_forward.1} parent=0 // pred_check_branch
    %21 = sbr.rel (0) target = $region21
  $region20: #{multi_agent_fc_forward.1} parent=0 // pred_region
    _
  $region21: #{multi_agent_fc_forward.1} parent=0 // pred_fallthru
    _
  // Predicated region
  $region22: #{multi_agent_fc_forward.1} parent=0 // pred_check
    _
  $region23: #{multi_agent_fc_forward.1} parent=0 // pred_check_branch
    %23 = sbr.rel (0) target = $region25
  $region24: #{multi_agent_fc_forward.1} parent=0 // pred_region
    _
  $region25: #{multi_agent_fc_forward.1} parent=0 // pred_fallthru
    _
  // Predicated region
  $region26: #{multi_agent_fc_forward.1} parent=0 // pred_check
    _
  $region27: #{multi_agent_fc_forward.1} parent=0 // pred_check_branch
    %25 = sbr.rel (0) target = $region29
  $region28: #{multi_agent_fc_forward.1} parent=0 // pred_region
    _
  $region29: #{multi_agent_fc_forward.1} parent=0 // pred_fallthru
    _
  %v26 = vld [vmem:[%s0] sm:$0xff]
  %v27 = vld [vmem:[%s0 + $0x8] sm:$0xff]
  %v28 = vld [vmem:[%s0 + $0x10] sm:$0xff]
  %v29 = vld [vmem:[%s1] sm:$0xff]
  %v30 = vld [vmem:[%s1 + $0x8] sm:$0xff]
  %v31 = vld [vmem:[%s2] sm:$0x1]
  %v33 = vlaneseq
  %v34 = vshrl.u32 %v33, 7
  %v35 = vsub.s32 0, %v34
  %v36 = vrot.slane %v31, %v35
  %vm38 = vcmask 130048
  %v40 = vsel %vm38, %v26, 0
  %v43 = vsel %vm38, %v27, 0
  %v46 = vsel %vm38, %v28, 0
  %48 = vmatprep.subr.mxu0 0.0
  %49 = vmatpush1.msra.mxu0 %v29
  %50 = vmatprep.subr.mxu0 0.0
  %51 = vmatpush1.msra.mxu0 %v30
  %52 = vmatprep.subr.mxu0 0.0
  %53 = vmatpush1.msra.mxu0 0.0
  %54 = vmatprep.subr.mxu0 0.0
  %55 = vmatpush1.msra.mxu0 0.0
  %56 = vmatprep.subr.mxu0 0.0
  %57 = vmatpush1.msra.mxu0 0.0
  %58 = vmatprep.subr.mxu0 0.0
  %59 = vmatpush1.msra.mxu0 0.0
  %60 = vmatprep.subr.mxu0 0.0
  %61 = vmatpush1.msra.mxu0 0.0
  %62 = vmatprep.subr.mxu0 0.0
  %63 = vmatpush1.msra.mxu0 0.0
  %64 = vmatprep.subr.mxu0 0.0
  %65 = vmatpush1.msra.mxu0 0.0
  %66 = vmatprep.subr.mxu0 0.0
  %67 = vmatpush1.msra.mxu0 0.0
  %68 = vmatprep.subr.mxu0 0.0
  %69 = vmatpush1.msra.mxu0 0.0
  %70 = vmatprep.subr.mxu0 0.0
  %71 = vmatpush1.msra.mxu0 0.0
  %72 = vmatprep.subr.mxu0 0.0
  %73 = vmatpush1.msra.mxu0 0.0
  %74 = vmatprep.subr.mxu0 0.0
  %75 = vmatpush1.msra.mxu0 0.0
  %76 = vmatprep.subr.mxu0 0.0
  %77 = vmatpush1.msra.mxu0 0.0
  %78 = vmatprep.subr.mxu0 0.0
  %79 = vmatpush1.msra.mxu0 0.0
  %80 = vmatprep.subr.mxu0 0.0
  %81 = vmatpush1.msra.mxu0 0.0
  %82 = vmatprep.subr.mxu0 0.0
  %83 = vmatpush1.msra.mxu0 0.0
  %84 = vmatprep.subr.mxu0 0.0
  %85 = vmatpush1.msra.mxu0 0.0
  %86 = vmatprep.subr.mxu0 0.0
  %87 = vmatpush1.msra.mxu0 0.0
  %88 = vmatprep.subr.mxu0 0.0
  %89 = vmatpush1.msra.mxu0 0.0
  %90 = vmatprep.subr.mxu0 0.0
  %91 = vmatpush1.msra.mxu0 0.0
  %92 = vmatprep.subr.mxu0 0.0
  %93 = vmatpush1.msra.mxu0 0.0
  %94 = vmatprep.subr.mxu0 0.0
  %95 = vmatpush1.msra.mxu0 0.0
  %96 = vmatprep.subr.mxu0 0.0
  %97 = vmatpush1.msra.mxu0 0.0
  %98 = vmatprep.subr.mxu0 0.0
  %99 = vmatpush1.msra.mxu0 0.0
  %100 = vmatprep.subr.mxu0 0.0
  %101 = vmatpush1.msra.mxu0 0.0
  %102 = vmatprep.subr.mxu0 0.0
  %103 = vmatpush1.msra.mxu0 0.0
  %104 = vmatprep.subr.mxu0 0.0
  %105 = vmatpush1.msra.mxu0 0.0
  %106 = vmatprep.subr.mxu0 0.0
  %107 = vmatpush1.msra.mxu0 0.0
  %108 = vmatprep.subr.mxu0 0.0
  %109 = vmatpush1.msra.mxu0 0.0
  %110 = vmatprep.subr.mxu0 0.0
  %111 = vmatpush1.msra.mxu0 0.0
  %112 = vmatprep.mubr.f32.mxu0 0.0
  %113 = vmatmul.mubr.f32.gmra.mrb[0].mxu0 %v40
  %v114 = vpop.f32.mrb[0].mxu0
  %v115 = vadd.f32 %v36, %v114
  %v116 = vpop.f32.mrb[0].mxu0
  %117 = vmatprep.mubr.f32.mxu0 0.0
  %118 = vmatmul.mubr.f32.gmra.mrb[0].mxu0 %v43
  %v119 = vpop.f32.mrb[0].mxu0
  %v120 = vadd.f32 %v36, %v119
  %v121 = vpop.f32.mrb[0].mxu0
  %122 = vmatprep.mubr.f32.mxu0 0.0
  %123 = vmatmul.mubr.f32.gmra.mrb[0].mxu0 %v46
  %v124 = vpop.f32.mrb[0].mxu0
  %v125 = vadd.f32 %v36, %v124
  %v126 = vpop.f32.mrb[0].mxu0
  %127 = vdwg.mxu0
  %v128 = vmax.f32 %v115, 0.0
  %v129 = vmax.f32 %v120, 0.0
  %v130 = vmax.f32 %v125, 0.0
  %v131 = vld [vmem:[%s3] sm:$0xff]
  %v132 = vld [vmem:[%s3 + $0x8] sm:$0xff]
  %v133 = vld [vmem:[%s3 + $0x10] sm:$0xff]
  %v134 = vld [vmem:[%s3 + $0x18] sm:$0xff]
  %v135 = vld [vmem:[%s3 + $0x20] sm:$0xff]
  %v136 = vld [vmem:[%s3 + $0x28] sm:$0xff]
  %v137 = vld [vmem:[%s3 + $0x30] sm:$0xff]
  %v138 = vld [vmem:[%s3 + $0x38] sm:$0xff]
  %v139 = vld [vmem:[%s4] sm:$0x1]
  %v141 = vlaneseq
  %v142 = vshrl.u32 %v141, 7
  %v143 = vsub.s32 0, %v142
  %v144 = vrot.slane %v139, %v143
  %vm146 = vcmask 523264
  %v148 = vsel %vm146, %v128, 0
  %v151 = vsel %vm146, %v129, 0
  %v154 = vsel %vm146, %v130, 0
  %156 = vmatprep.subr.mxu0 0.0
  %157 = vmatpush1.msra.mxu0 %v131
  %158 = vmatprep.subr.mxu0 0.0
  %159 = vmatpush1.msra.mxu0 %v132
  %160 = vmatprep.subr.mxu0 0.0
  %161 = vmatpush1.msra.mxu0 %v133
  %162 = vmatprep.subr.mxu0 0.0
  %163 = vmatpush1.msra.mxu0 %v134
  %164 = vmatprep.subr.mxu0 0.0
  %165 = vmatpush1.msra.mxu0 %v135
  %166 = vmatprep.subr.mxu0 0.0
  %167 = vmatpush1.msra.mxu0 %v136
  %168 = vmatprep.subr.mxu0 0.0
  %169 = vmatpush1.msra.mxu0 %v137
  %170 = vmatprep.subr.mxu0 0.0
  %171 = vmatpush1.msra.mxu0 %v138
  %172 = vmatprep.subr.mxu0 0.0
  %173 = vmatpush1.msra.mxu0 0.0
  %174 = vmatprep.subr.mxu0 0.0
  %175 = vmatpush1.msra.mxu0 0.0
  %176 = vmatprep.subr.mxu0 0.0
  %177 = vmatpush1.msra.mxu0 0.0
  %178 = vmatprep.subr.mxu0 0.0
  %179 = vmatpush1.msra.mxu0 0.0
  %180 = vmatprep.subr.mxu0 0.0
  %181 = vmatpush1.msra.mxu0 0.0
  %182 = vmatprep.subr.mxu0 0.0
  %183 = vmatpush1.msra.mxu0 0.0
  %184 = vmatprep.subr.mxu0 0.0
  %185 = vmatpush1.msra.mxu0 0.0
  %186 = vmatprep.subr.mxu0 0.0
  %187 = vmatpush1.msra.mxu0 0.0
  %188 = vmatprep.subr.mxu0 0.0
  %189 = vmatpush1.msra.mxu0 0.0
  %190 = vmatprep.subr.mxu0 0.0
  %191 = vmatpush1.msra.mxu0 0.0
  %192 = vmatprep.subr.mxu0 0.0
  %193 = vmatpush1.msra.mxu0 0.0
  %194 = vmatprep.subr.mxu0 0.0
  %195 = vmatpush1.msra.mxu0 0.0
  %196 = vmatprep.subr.mxu0 0.0
  %197 = vmatpush1.msra.mxu0 0.0
  %198 = vmatprep.subr.mxu0 0.0
  %199 = vmatpush1.msra.mxu0 0.0
  %200 = vmatprep.subr.mxu0 0.0
  %201 = vmatpush1.msra.mxu0 0.0
  %202 = vmatprep.subr.mxu0 0.0
  %203 = vmatpush1.msra.mxu0 0.0
  %204 = vmatprep.subr.mxu0 0.0
  %205 = vmatpush1.msra.mxu0 0.0
  %206 = vmatprep.subr.mxu0 0.0
  %207 = vmatpush1.msra.mxu0 0.0
  %208 = vmatprep.subr.mxu0 0.0
  %209 = vmatpush1.msra.mxu0 0.0
  %210 = vmatprep.subr.mxu0 0.0
  %211 = vmatpush1.msra.mxu0 0.0
  %212 = vmatprep.subr.mxu0 0.0
  %213 = vmatpush1.msra.mxu0 0.0
  %214 = vmatprep.subr.mxu0 0.0
  %215 = vmatpush1.msra.mxu0 0.0
  %216 = vmatprep.subr.mxu0 0.0
  %217 = vmatpush1.msra.mxu0 0.0
  %218 = vmatprep.subr.mxu0 0.0
  %219 = vmatpush1.msra.mxu0 0.0
  %220 = vmatprep.mubr.f32.mxu0 0.0
  %221 = vmatmul.mubr.f32.gmra.mrb[0].mxu0 %v148
  %v222 = vpop.f32.mrb[0].mxu0
  %v223 = vadd.f32 %v144, %v222
  %v224 = vpop.f32.mrb[0].mxu0
  %225 = vmatprep.mubr.f32.mxu0 0.0
  %226 = vmatmul.mubr.f32.gmra.mrb[0].mxu0 %v151
  %v227 = vpop.f32.mrb[0].mxu0
  %v228 = vadd.f32 %v144, %v227
  %v229 = vpop.f32.mrb[0].mxu0
  %230 = vmatprep.mubr.f32.mxu0 0.0
  %231 = vmatmul.mubr.f32.gmra.mrb[0].mxu0 %v154
  %v232 = vpop.f32.mrb[0].mxu0
  %v233 = vadd.f32 %v144, %v232
  %v234 = vpop.f32.mrb[0].mxu0
  %235 = vdwg.mxu0
  %v236 = vmax.f32 %v223, 0.0
  %v237 = vmax.f32 %v228, 0.0
  %v238 = vmax.f32 %v233, 0.0
  %v239 = vld [vmem:[%s5] sm:$0xff]
  %v240 = vld [vmem:[%s5 + $0x8] sm:$0xff]
  %v241 = vld [vmem:[%s5 + $0x10] sm:$0xff]
  %v242 = vld [vmem:[%s5 + $0x18] sm:$0xff]
  %v243 = vld [vmem:[%s5 + $0x20] sm:$0xff]
  %v244 = vld [vmem:[%s5 + $0x28] sm:$0xff]
  %v245 = vld [vmem:[%s5 + $0x30] sm:$0xff]
  %v246 = vld [vmem:[%s5 + $0x38] sm:$0xff]
  %v247 = vld [vmem:[%s6] sm:$0x1]
  %v249 = vlaneseq
  %v250 = vshrl.u32 %v249, 7
  %v251 = vsub.s32 0, %v250
  %v252 = vrot.slane %v247, %v251
  %v255 = vsel %vm146, %v236, 0
  %v258 = vsel %vm146, %v237, 0
  %v261 = vsel %vm146, %v238, 0
  %263 = vmatprep.subr.mxu0 0.0
  %264 = vmatpush1.msra.mxu0 %v239
  %265 = vmatprep.subr.mxu0 0.0
  %266 = vmatpush1.msra.mxu0 %v240
  %267 = vmatprep.subr.mxu0 0.0
  %268 = vmatpush1.msra.mxu0 %v241
  %269 = vmatprep.subr.mxu0 0.0
  %270 = vmatpush1.msra.mxu0 %v242
  %271 = vmatprep.subr.mxu0 0.0
  %272 = vmatpush1.msra.mxu0 %v243
  %273 = vmatprep.subr.mxu0 0.0
  %274 = vmatpush1.msra.mxu0 %v244
  %275 = vmatprep.subr.mxu0 0.0
  %276 = vmatpush1.msra.mxu0 %v245
  %277 = vmatprep.subr.mxu0 0.0
  %278 = vmatpush1.msra.mxu0 %v246
  %279 = vmatprep.subr.mxu0 0.0
  %280 = vmatpush1.msra.mxu0 0.0
  %281 = vmatprep.subr.mxu0 0.0
  %282 = vmatpush1.msra.mxu0 0.0
  %283 = vmatprep.subr.mxu0 0.0
  %284 = vmatpush1.msra.mxu0 0.0
  %285 = vmatprep.subr.mxu0 0.0
  %286 = vmatpush1.msra.mxu0 0.0
  %287 = vmatprep.subr.mxu0 0.0
  %288 = vmatpush1.msra.mxu0 0.0
  %289 = vmatprep.subr.mxu0 0.0
  %290 = vmatpush1.msra.mxu0 0.0
  %291 = vmatprep.subr.mxu0 0.0
  %292 = vmatpush1.msra.mxu0 0.0
  %293 = vmatprep.subr.mxu0 0.0
  %294 = vmatpush1.msra.mxu0 0.0
  %295 = vmatprep.subr.mxu0 0.0
  %296 = vmatpush1.msra.mxu0 0.0
  %297 = vmatprep.subr.mxu0 0.0
  %298 = vmatpush1.msra.mxu0 0.0
  %299 = vmatprep.subr.mxu0 0.0
  %300 = vmatpush1.msra.mxu0 0.0
  %301 = vmatprep.subr.mxu0 0.0
  %302 = vmatpush1.msra.mxu0 0.0
  %303 = vmatprep.subr.mxu0 0.0
  %304 = vmatpush1.msra.mxu0 0.0
  %305 = vmatprep.subr.mxu0 0.0
  %306 = vmatpush1.msra.mxu0 0.0
  %307 = vmatprep.subr.mxu0 0.0
  %308 = vmatpush1.msra.mxu0 0.0
  %309 = vmatprep.subr.mxu0 0.0
  %310 = vmatpush1.msra.mxu0 0.0
  %311 = vmatprep.subr.mxu0 0.0
  %312 = vmatpush1.msra.mxu0 0.0
  %313 = vmatprep.subr.mxu0 0.0
  %314 = vmatpush1.msra.mxu0 0.0
  %315 = vmatprep.subr.mxu0 0.0
  %316 = vmatpush1.msra.mxu0 0.0
  %317 = vmatprep.subr.mxu0 0.0
  %318 = vmatpush1.msra.mxu0 0.0
  %319 = vmatprep.subr.mxu0 0.0
  %320 = vmatpush1.msra.mxu0 0.0
  %321 = vmatprep.subr.mxu0 0.0
  %322 = vmatpush1.msra.mxu0 0.0
  %323 = vmatprep.subr.mxu0 0.0
  %324 = vmatpush1.msra.mxu0 0.0
  %325 = vmatprep.subr.mxu0 0.0
  %326 = vmatpush1.msra.mxu0 0.0
  %327 = vmatprep.mubr.f32.mxu0 0.0
  %328 = vmatmul.mubr.f32.gmra.mrb[0].mxu0 %v255
  %v329 = vpop.f32.mrb[0].mxu0
  %v330 = vadd.f32 %v252, %v329
  %v331 = vpop.f32.mrb[0].mxu0
  %332 = vmatprep.mubr.f32.mxu0 0.0
  %333 = vmatmul.mubr.f32.gmra.mrb[0].mxu0 %v258
  %v334 = vpop.f32.mrb[0].mxu0
  %v335 = vadd.f32 %v252, %v334
  %v336 = vpop.f32.mrb[0].mxu0
  %337 = vmatprep.mubr.f32.mxu0 0.0
  %338 = vmatmul.mubr.f32.gmra.mrb[0].mxu0 %v261
  %v339 = vpop.f32.mrb[0].mxu0
  %v340 = vadd.f32 %v252, %v339
  %v341 = vpop.f32.mrb[0].mxu0
  %342 = vdwg.mxu0
  %vm343 = vcmp.eq.f32.partialorder %v26, 1.0
  %vm344 = vcmp.eq.f32.partialorder %v27, 1.0
  %vm345 = vcmp.eq.f32.partialorder %v28, 1.0
  %v346 = vsel %vm343, 1, 0
  %v347 = vsel %vm344, 1, 0
  %v348 = vsel %vm345, 1, 0
  %349 = vset.pattern.permute.xlu0 16
  %350 = vperm.xlu0 %349, %v346
  %v351 = vpop.permute.xlu0 %350
  %352 = vset.pattern.permute.xlu0 16
  %353 = vperm.xlu0 %352, %v347
  %v354 = vpop.permute.xlu0 %353
  %355 = vset.pattern.permute.xlu0 16
  %356 = vperm.xlu0 %355, %v348
  %v357 = vpop.permute.xlu0 %356
  %vm358 = vcmp.eq.s32.totalorder %v351, 1
  %vm359 = vcmp.eq.s32.totalorder %v354, 1
  %vm360 = vcmp.eq.s32.totalorder %v357, 1
  %364 = vrot.lane.b32.xlu0 %v330, 8
  %v365 = vpop.permute.xlu0 %364
  %366 = vrot.lane.b32.xlu0 %v335, 8
  %v367 = vpop.permute.xlu0 %366
  %368 = vrot.lane.b32.xlu0 %v340, 8
  %v369 = vpop.permute.xlu0 %368
  %v373 = vsel %vm358, %v330, %v365
  %v374 = vsel %vm359, %v335, %v367
  %v375 = vsel %vm360, %v340, %v369
  %379 = vrot.lane.b32.xlu0 %v373, 120
  %v380 = vpop.permute.xlu0 %379
  %381 = vrot.lane.b32.xlu0 %v374, 120
  %v382 = vpop.permute.xlu0 %381
  %383 = vrot.lane.b32.xlu0 %v375, 120
  %v384 = vpop.permute.xlu0 %383
  %vm388 = vcmask 64512
  %389 = vst.msk [vmem:[%s7] sm:$0xff] %vm388, %v380
  %390 = vst.msk [vmem:[%s7 + $0x8] sm:$0xff] %vm388, %v382
  %391 = vst.msk [vmem:[%s7 + $0x10] sm:$0xff] %vm388, %v384
  // Predicated region
  $region30: #{multi_agent_fc_forward.1} parent=0 // pred_check
    _
  $region31: #{multi_agent_fc_forward.1} parent=0 // pred_check_branch
    %393 = sbr.rel (0) target = $region33
  $region32: #{multi_agent_fc_forward.1} parent=0 // pred_region
    _
  $region33: #{multi_agent_fc_forward.1} parent=0 // pred_fallthru
    _
  // Predicated region
  $region34: #{multi_agent_fc_forward.1} parent=0 // pred_check
    _
  $region35: #{multi_agent_fc_forward.1} parent=0 // pred_check_branch
    %395 = sbr.rel (0) target = $region37
  $region36: #{multi_agent_fc_forward.1} parent=0 // pred_region
    _
  $region37: #{multi_agent_fc_forward.1} parent=0 // pred_fallthru
    _

</llo_original>
